<compile_context>
chip_gen: v7x
topology: tpu7x:2x2x1
jax: 0.10.0
libtpu: 0.0.40
codegen_flags: <defaults>
</compile_context>

<pallas_src>
import functools

import jax
import jax.numpy as jnp
from jax.experimental import pallas as pl
from jax.experimental.pallas import tpu as pltpu


# ---------------------------------------------------------------------------
# Kernels
# ---------------------------------------------------------------------------
def _mlp_logits(x_ref, w1_ref, b1_ref, w2_ref, b2_ref, w3_ref, b3_ref):
    """Linear -> tanh -> Linear -> tanh -> Linear, bf16 MXU ops, f32 accum."""
    xb = x_ref[...].astype(jnp.bfloat16)
    h1 = jnp.tanh(
        jnp.dot(xb, w1_ref[...], preferred_element_type=jnp.float32)
        + b1_ref[...])
    h2 = jnp.tanh(
        jnp.dot(h1.astype(jnp.bfloat16), w2_ref[...],
                preferred_element_type=jnp.float32) + b2_ref[...])
    logits = (
        jnp.dot(h2.astype(jnp.bfloat16), w3_ref[...],
                preferred_element_type=jnp.float32) + b3_ref[...])
    return logits


def ner_infer_kernel(x_ref, w1_ref, b1_ref, w2_ref, b2_ref, w3_ref, b3_ref,
                     logits_ref):
    """Inference path: logits only, no cross-entropy work."""
    logits_ref[...] = _mlp_logits(x_ref, w1_ref, b1_ref, w2_ref, b2_ref,
                                  w3_ref, b3_ref)


def ner_loss_kernel(x_ref, lab_ref, w1_ref, b1_ref, w2_ref, b2_ref, w3_ref,
                    b3_ref, logits_ref, loss_ref, *, num_classes):
    """Training path: logits + per-row cross-entropy (f32)."""
    logits = _mlp_logits(x_ref, w1_ref, b1_ref, w2_ref, b2_ref, w3_ref, b3_ref)
    logits_ref[...] = logits

    cls_iota = jax.lax.broadcasted_iota(jnp.int32, logits.shape, 1)
    # Mask lane-padded (fake) classes out of the logsumexp; real ones untouched.
    if logits.shape[-1] > num_classes:
        lse_in = jnp.where(cls_iota < num_classes, logits, jnp.float32(-1e30))
    else:
        lse_in = logits

    m = jnp.max(lse_in, axis=-1, keepdims=True)
    lse = m + jnp.log(jnp.sum(jnp.exp(lse_in - m), axis=-1, keepdims=True))
    onehot = (cls_iota == lab_ref[...]).astype(jnp.float32)
    picked = jnp.sum(logits * onehot, axis=-1, keepdims=True)
    # Per-row loss; wrapper does the masked mean over the true batch size.
    loss_ref[...] = lse - picked


# ---------------------------------------------------------------------------
# Params
# ---------------------------------------------------------------------------
def init_ner_params(key, vec_dim, num_classes, hidden_dim=300):
    """PyTorch-Linear-style init (uniform +-1/sqrt(fan_in)).

    Weights are stored bf16 (native MXU dtype, halves weight DMA); biases f32.
    Note: hidden_dim that is a multiple of 128 (e.g. 256/384 instead of 300)
    avoids masked lane tiles and partial MXU tiles.
    """
    def linear(k, fan_in, fan_out):
        kw, kb = jax.random.split(k)
        bound = 1.0 / jnp.sqrt(jnp.float32(fan_in))
        w = jax.random.uniform(kw, (fan_in, fan_out), jnp.float32, -bound, bound)
        b = jax.random.uniform(kb, (1, fan_out), jnp.float32, -bound, bound)
        return w.astype(jnp.bfloat16), b

    k1, k2, k3 = jax.random.split(key, 3)
    w1, b1 = linear(k1, vec_dim, hidden_dim)
    w2, b2 = linear(k2, hidden_dim, hidden_dim)
    w3, b3 = linear(k3, hidden_dim, num_classes)
    return (w1, b1, w2, b2, w3, b3)


# ---------------------------------------------------------------------------
# Wrapper
# ---------------------------------------------------------------------------
def _round_up(v, m):
    return ((v + m - 1) // m) * m


def _choose_tm(n):
    # >=512-row tiles reach ~85% of HBM roofline; stay modest so double
    # buffers + weights fit the v7x 64 MiB VMEM comfortably.
    if n <= 512:
        return max(8, _round_up(n, 8))
    return 512


def _pad_rows(a, n_pad):
    n = a.shape[0]
    if n_pad == n:
        return a
    return jnp.pad(a, ((0, n_pad - n), (0, 0)))


@functools.partial(jax.jit, static_argnames=("has_labels",))
def _ner_pallas_forward(x, lab, params, has_labels):
    w1, b1, w2, b2, w3, b3 = params
    n, d = x.shape
    h = w1.shape[1]
    c = w3.shape[1]

    tm = _choose_tm(n)
    n_pad = pl.cdiv(n, tm) * tm
    c_pad = _round_up(c, 128)          # lane-dense logits store
    grid = (n_pad // tm,)

    x_p = _pad_rows(x.astype(jnp.float32), n_pad)
    if c_pad != c:
        w3 = jnp.pad(w3, ((0, 0), (0, c_pad - c)))
        b3 = jnp.pad(b3, ((0, 0), (0, c_pad - c)))

    rowmap = lambda i: (i, 0)
    constmap = lambda i: (0, 0)
    weight_specs = [
        pl.BlockSpec((d, h), constmap), pl.BlockSpec((1, h), constmap),
        pl.BlockSpec((h, h), constmap), pl.BlockSpec((1, h), constmap),
        pl.BlockSpec((h, c_pad), constmap), pl.BlockSpec((1, c_pad), constmap),
    ]
    compiler_params = pltpu.CompilerParams(
        dimension_semantics=("parallel",),       # v7x megacore sharding
        vmem_limit_bytes=48 * 1024 * 1024,       # above 32 MiB scoped default
    )

    if has_labels:
        lab_p = _pad_rows(lab.astype(jnp.int32), n_pad)
        logits_p, row_loss = pl.pallas_call(
            functools.partial(ner_loss_kernel, num_classes=c),
            grid=grid,
            in_specs=[pl.BlockSpec((tm, d), rowmap),
                      pl.BlockSpec((tm, 1), rowmap)] + weight_specs,
            out_specs=(pl.BlockSpec((tm, c_pad), rowmap),
                       pl.BlockSpec((tm, 1), rowmap)),
            out_shape=(jax.ShapeDtypeStruct((n_pad, c_pad), jnp.float32),
                       jax.ShapeDtypeStruct((n_pad, 1), jnp.float32)),
            compiler_params=compiler_params,
        )(x_p, lab_p, w1, b1, w2, b2, w3, b3)
        # Masked mean: only the true N rows contribute (padding rows dropped).
        loss = jnp.sum(row_loss[:n, 0]) / jnp.float32(n)
        return logits_p[:n, :c], loss

    logits_p = pl.pallas_call(
        ner_infer_kernel,
        grid=grid,
        in_specs=[pl.BlockSpec((tm, d), rowmap)] + weight_specs,
        out_specs=pl.BlockSpec((tm, c_pad), rowmap),
        out_shape=jax.ShapeDtypeStruct((n_pad, c_pad), jnp.float32),
        compiler_params=compiler_params,
    )(x_p, w1, b1, w2, b2, w3, b3)
    return logits_p[:n, :c], None


def ner_forward(x, params, labels=None):
    """Mirrors NerNN.forward: returns (logits, None) or (logits, loss)."""
    n = x.shape[0]
    if labels is None:
        dummy = jnp.zeros((n, 1), jnp.int32)
        logits, _ = _ner_pallas_forward(x, dummy, params, has_labels=False)
        return logits, None
    lab = labels.reshape(n, 1).astype(jnp.int32)
    return _ner_pallas_forward(x, lab, params, has_labels=True)


# ---------------------------------------------------------------------------
# Reference + self-test
# ---------------------------------------------------------------------------
def _reference(x, params, labels):
    """Pure-JAX reference using the same bf16 operand / f32 accumulation path."""
    w1, b1, w2, b2, w3, b3 = params
    h1 = jnp.tanh(jnp.dot(x.astype(jnp.bfloat16), w1,
                          preferred_element_type=jnp.float32) + b1)
    h2 = jnp.tanh(jnp.dot(h1.astype(jnp.bfloat16), w2,
                          preferred_element_type=jnp.float32) + b2)
    logits = jnp.dot(h2.astype(jnp.bfloat16), w3,
                     preferred_element_type=jnp.float32) + b3
    lse = jax.nn.logsumexp(logits, axis=-1)
    picked = jnp.take_along_axis(logits, labels[:, None], axis=-1)[:, 0]
    return logits, jnp.mean(lse - picked)


if __name__ == "__main__":
    # Small shapes consistent with the module (hidden chosen as a multiple of
    # 128 per the tiling guidance; the original default of 300 also works).
    batch, vec_dim, hidden_dim, num_classes = 8, 16, 128, 8

    key = jax.random.PRNGKey(0)
    kx, kl, kp, kx2, kl2 = jax.random.split(key, 5)

    x = jax.random.normal(kx, (batch, vec_dim), jnp.float32)
    labels = jax.random.randint(kl, (batch,), 0, num_classes, jnp.int32)
    params = init_ner_params(kp, vec_dim, num_classes, hidden_dim)

    # Inference path (no CE work) and training path (logits + loss).
    logits_only, none_loss = ner_forward(x, params, labels=None)
    logits, loss = ner_forward(x, params, labels=labels)
    jax.block_until_ready((logits_only, logits, loss))

    ref_logits, ref_loss = _reference(x, params, labels)
    assert none_loss is None
    assert logits.shape == (batch, num_classes)
    assert jnp.allclose(logits_only, logits, atol=1e-5, rtol=1e-5)
    assert jnp.allclose(logits, ref_logits, atol=2e-2, rtol=2e-2)
    assert jnp.allclose(loss, ref_loss, atol=2e-2, rtol=2e-2)

    # Larger batch: exercises multi-tile grid + partial-tile masking of the mean.
    big_n = 600
    xb = jax.random.normal(kx2, (big_n, vec_dim), jnp.float32)
    lb = jax.random.randint(kl2, (big_n,), 0, num_classes, jnp.int32)
    big_logits, big_loss = ner_forward(xb, params, labels=lb)
    jax.block_until_ready((big_logits, big_loss))
    ref_big_logits, ref_big_loss = _reference(xb, params, lb)
    assert big_logits.shape == (big_n, num_classes)
    assert jnp.allclose(big_logits, ref_big_logits, atol=2e-2, rtol=2e-2)
    assert jnp.allclose(big_loss, ref_big_loss, atol=2e-2, rtol=2e-2)

    print("KERNEL_OK")
</pallas_src>

<mosaic_0001>
module attributes {stable_mosaic.version = 11 : i64} {
  func.func @ner_infer_kernel(%arg0: i32, %arg1: memref<8x16xf32, #tpu.memory_space<vmem>>, %arg2: memref<16x128xbf16, #tpu.memory_space<vmem>>, %arg3: memref<1x128xf32, #tpu.memory_space<vmem>>, %arg4: memref<128x128xbf16, #tpu.memory_space<vmem>>, %arg5: memref<1x128xf32, #tpu.memory_space<vmem>>, %arg6: memref<128x128xbf16, #tpu.memory_space<vmem>>, %arg7: memref<1x128xf32, #tpu.memory_space<vmem>>, %arg8: memref<8x128xf32, #tpu.memory_space<vmem>>) attributes {dimension_semantics = [#tpu.dimension_semantics<parallel>], iteration_bounds = array<i64: 1>, scalar_prefetch = 0 : i64, scratch_operands = 0 : i64, tpu.core_type = #tpu.core_type<tc>, window_params = [{transform_indices = @transform_0, window_bounds = array<i64: 8, 16>}, {pipeline_mode = #tpu.pipeline_mode<synchronous>, transform_indices = @transform_1, window_bounds = array<i64: 16, 128>}, {pipeline_mode = #tpu.pipeline_mode<synchronous>, transform_indices = @transform_2, window_bounds = array<i64: 1, 128>}, {pipeline_mode = #tpu.pipeline_mode<synchronous>, transform_indices = @transform_3, window_bounds = array<i64: 128, 128>}, {pipeline_mode = #tpu.pipeline_mode<synchronous>, transform_indices = @transform_4, window_bounds = array<i64: 1, 128>}, {pipeline_mode = #tpu.pipeline_mode<synchronous>, transform_indices = @transform_5, window_bounds = array<i64: 128, 128>}, {pipeline_mode = #tpu.pipeline_mode<synchronous>, transform_indices = @transform_6, window_bounds = array<i64: 1, 128>}, {transform_indices = @transform_7, window_bounds = array<i64: 8, 128>}]} {
    %c0 = arith.constant 0 : index
    %c0_0 = arith.constant 0 : index
    %0 = vector.load %arg1[%c0, %c0_0] : memref<8x16xf32, #tpu.memory_space<vmem>>, vector<8x16xf32>
    %1 = arith.truncf %0 : vector<8x16xf32> to vector<8x16xbf16>
    %c0_1 = arith.constant 0 : index
    %c0_2 = arith.constant 0 : index
    %2 = vector.load %arg2[%c0_1, %c0_2] : memref<16x128xbf16, #tpu.memory_space<vmem>>, vector<16x128xbf16>
    %cst = arith.constant dense<0.000000e+00> : vector<8x128xf32>
    %3 = tpu.matmul %1, %2, %cst {dimension_numbers = #tpu.dot_dimension_numbers<[1], [0], [0], [1], [0, 0, 1, 1], [], []>} : vector<8x16xbf16>, vector<16x128xbf16>, vector<8x128xf32> -> vector<8x128xf32>
    %c0_3 = arith.constant 0 : index
    %c0_4 = arith.constant 0 : index
    %4 = vector.load %arg3[%c0_3, %c0_4] : memref<1x128xf32, #tpu.memory_space<vmem>>, vector<1x128xf32>
    %5 = vector.broadcast %4 : vector<1x128xf32> to vector<8x128xf32>
    %6 = arith.addf %3, %5 : vector<8x128xf32>
    %7 = math.tanh %6 : vector<8x128xf32>
    %8 = arith.truncf %7 : vector<8x128xf32> to vector<8x128xbf16>
    %c0_5 = arith.constant 0 : index
    %c0_6 = arith.constant 0 : index
    %9 = vector.load %arg4[%c0_5, %c0_6] : memref<128x128xbf16, #tpu.memory_space<vmem>>, vector<128x128xbf16>
    %cst_7 = arith.constant dense<0.000000e+00> : vector<8x128xf32>
    %10 = tpu.matmul %8, %9, %cst_7 {dimension_numbers = #tpu.dot_dimension_numbers<[1], [0], [0], [1], [0, 0, 1, 1], [], []>} : vector<8x128xbf16>, vector<128x128xbf16>, vector<8x128xf32> -> vector<8x128xf32>
    %c0_8 = arith.constant 0 : index
    %c0_9 = arith.constant 0 : index
    %11 = vector.load %arg5[%c0_8, %c0_9] : memref<1x128xf32, #tpu.memory_space<vmem>>, vector<1x128xf32>
    %12 = vector.broadcast %11 : vector<1x128xf32> to vector<8x128xf32>
    %13 = arith.addf %10, %12 : vector<8x128xf32>
    %14 = math.tanh %13 : vector<8x128xf32>
    %15 = arith.truncf %14 : vector<8x128xf32> to vector<8x128xbf16>
    %c0_10 = arith.constant 0 : index
    %c0_11 = arith.constant 0 : index
    %16 = vector.load %arg6[%c0_10, %c0_11] : memref<128x128xbf16, #tpu.memory_space<vmem>>, vector<128x128xbf16>
    %cst_12 = arith.constant dense<0.000000e+00> : vector<8x128xf32>
    %17 = tpu.matmul %15, %16, %cst_12 {dimension_numbers = #tpu.dot_dimension_numbers<[1], [0], [0], [1], [0, 0, 1, 1], [], []>} : vector<8x128xbf16>, vector<128x128xbf16>, vector<8x128xf32> -> vector<8x128xf32>
    %c0_13 = arith.constant 0 : index
    %c0_14 = arith.constant 0 : index
    %18 = vector.load %arg7[%c0_13, %c0_14] : memref<1x128xf32, #tpu.memory_space<vmem>>, vector<1x128xf32>
    %19 = vector.broadcast %18 : vector<1x128xf32> to vector<8x128xf32>
    %20 = arith.addf %17, %19 : vector<8x128xf32>
    %c0_15 = arith.constant 0 : index
    %c0_16 = arith.constant 0 : index
    %21 = vector.load %arg8[%c0_15, %c0_16] : memref<8x128xf32, #tpu.memory_space<vmem>>, vector<8x128xf32>
    tpu.vector_store %arg8[%c0_15, %c0_16], %20 {strides = array<i32>} : memref<8x128xf32, #tpu.memory_space<vmem>>, vector<8x128xf32>,
    return
  }
  func.func @transform_0(%arg0: i32) -> (i32, i32) {
    %c0_i32 = arith.constant 0 : i32
    %c0_i32_0 = arith.constant 0 : i32
    return %arg0, %c0_i32 : i32, i32
  }
  func.func @transform_1(%arg0: i32) -> (i32, i32) {
    %c0_i32 = arith.constant 0 : i32
    %c0_i32_0 = arith.constant 0 : i32
    %c0_i32_1 = arith.constant 0 : i32
    return %c0_i32, %c0_i32_0 : i32, i32
  }
  func.func @transform_2(%arg0: i32) -> (i32, i32) {
    %c0_i32 = arith.constant 0 : i32
    %c0_i32_0 = arith.constant 0 : i32
    %c0_i32_1 = arith.constant 0 : i32
    return %c0_i32, %c0_i32_0 : i32, i32
  }
  func.func @transform_3(%arg0: i32) -> (i32, i32) {
    %c0_i32 = arith.constant 0 : i32
    %c0_i32_0 = arith.constant 0 : i32
    %c0_i32_1 = arith.constant 0 : i32
    return %c0_i32, %c0_i32_0 : i32, i32
  }
  func.func @transform_4(%arg0: i32) -> (i32, i32) {
    %c0_i32 = arith.constant 0 : i32
    %c0_i32_0 = arith.constant 0 : i32
    %c0_i32_1 = arith.constant 0 : i32
    return %c0_i32, %c0_i32_0 : i32, i32
  }
  func.func @transform_5(%arg0: i32) -> (i32, i32) {
    %c0_i32 = arith.constant 0 : i32
    %c0_i32_0 = arith.constant 0 : i32
    %c0_i32_1 = arith.constant 0 : i32
    return %c0_i32, %c0_i32_0 : i32, i32
  }
  func.func @transform_6(%arg0: i32) -> (i32, i32) {
    %c0_i32 = arith.constant 0 : i32
    %c0_i32_0 = arith.constant 0 : i32
    %c0_i32_1 = arith.constant 0 : i32
    return %c0_i32, %c0_i32_0 : i32, i32
  }
  func.func @transform_7(%arg0: i32) -> (i32, i32) {
    %c0_i32 = arith.constant 0 : i32
    %c0_i32_0 = arith.constant 0 : i32
    return %arg0, %c0_i32 : i32, i32
  }
}

</mosaic_0001>

<llo_original>
// kernel: _ner_pallas_forward.1
$region0: #{_ner_pallas_forward.1}
  #allocation0 [shape = 'u32[]', space=smem, size = 0x4, offset = 0x4, fixed_abs, tag = 'smem constant byte address 0x4 - core index']
  #allocation1 [shape = 'u32[144,128]{1,0:T(1,128)}', space=vmem, size = 0x12000, scoped, tag = 'internal scratch']
  %s0 = inlined_call_operand.vmem [shape: f32[8,16], index: 0, kind: input, shape index: {}]
  %s1 = inlined_call_operand.vmem [shape: bf16[16,128], index: 1, kind: input, shape index: {}]
  %s2 = inlined_call_operand.vmem [shape: f32[1,128], index: 2, kind: input, shape index: {}]
  %s3 = inlined_call_operand.vmem [shape: bf16[128,128], index: 3, kind: input, shape index: {}]
  %s4 = inlined_call_operand.vmem [shape: f32[1,128], index: 4, kind: input, shape index: {}]
  %s5 = inlined_call_operand.vmem [shape: bf16[128,128], index: 5, kind: input, shape index: {}]
  %s6 = inlined_call_operand.vmem [shape: f32[1,128], index: 6, kind: input, shape index: {}]
  %s7 = inlined_call_operand.hbm [shape: f32[8,128], index: 7, kind: output, shape index: {}]
  %s8 = sld [smem:[#allocation0]]
  $region38: #{_ner_pallas_forward.1} parent=0
    _
  %s10 = ssub.s32 1, %s8
  %s11 = scalar_select 0, %s10, %s8
  $region1: #{_ner_pallas_forward.1} parent=0
    #allocation2 [shape = 'u8[4096]{0}', space=vmem, size = 0x1000, scoped, tag = 'output window, operand 0, single buffered']
    #allocation3 [shape = 's32[1]{0}', space=sflag, size = 0x4, scoped, tag = 'scoped memory for _ner_pallas_forward.1']
    %12 = vsyncpa [#allocation3], 0
    // Predicated region
    $region2: #{_ner_pallas_forward.1} parent=1 // pred_check
      _
    $region3: #{_ner_pallas_forward.1} parent=1 // pred_check_branch
      %14 = sbr.rel (0) target = $region5
    $region4: #{_ner_pallas_forward.1} parent=1 // pred_region
      _
    $region5: #{_ner_pallas_forward.1} parent=1 // pred_fallthru
      _
    // Predicated region
    $region6: #{_ner_pallas_forward.1} parent=1 // pred_check
      _
    $region7: #{_ner_pallas_forward.1} parent=1 // pred_check_branch
      %16 = sbr.rel (0) target = $region9
    $region8: #{_ner_pallas_forward.1} parent=1 // pred_region
      _
    $region9: #{_ner_pallas_forward.1} parent=1 // pred_fallthru
      _
    // Predicated region
    $region10: #{_ner_pallas_forward.1} parent=1 // pred_check
      _
    $region11: #{_ner_pallas_forward.1} parent=1 // pred_check_branch
      %18 = sbr.rel (0) target = $region13
    $region12: #{_ner_pallas_forward.1} parent=1 // pred_region
      _
    $region13: #{_ner_pallas_forward.1} parent=1 // pred_fallthru
      _
    // Predicated region
    $region14: #{_ner_pallas_forward.1} parent=1 // pred_check
      _
    $region15: #{_ner_pallas_forward.1} parent=1 // pred_check_branch
      %20 = sbr.rel (0) target = $region17
    $region16: #{_ner_pallas_forward.1} parent=1 // pred_region
      _
    $region17: #{_ner_pallas_forward.1} parent=1 // pred_fallthru
      _
    // Predicated region
    $region18: #{_ner_pallas_forward.1} parent=1 // pred_check
      _
    $region19: #{_ner_pallas_forward.1} parent=1 // pred_check_branch
      %22 = sbr.rel (0) target = $region21
    $region20: #{_ner_pallas_forward.1} parent=1 // pred_region
      _
    $region21: #{_ner_pallas_forward.1} parent=1 // pred_fallthru
      _
    // Predicated region
    $region22: #{_ner_pallas_forward.1} parent=1 // pred_check
      _
    $region23: #{_ner_pallas_forward.1} parent=1 // pred_check_branch
      %24 = sbr.rel (0) target = $region25
    $region24: #{_ner_pallas_forward.1} parent=1 // pred_region
      _
    $region25: #{_ner_pallas_forward.1} parent=1 // pred_fallthru
      _
    // Predicated region
    $region26: #{_ner_pallas_forward.1} parent=1 // pred_check
      _
    $region27: #{_ner_pallas_forward.1} parent=1 // pred_check_branch
      %26 = sbr.rel (0) target = $region29
    $region28: #{_ner_pallas_forward.1} parent=1 // pred_region
      _
    $region29: #{_ner_pallas_forward.1} parent=1 // pred_fallthru
      _
    %v28 = vld [vmem:[%s0] sm:$0xff]
    %v29 = vpack.c.bf16 %v28, %v28
    %v30 = vld [vmem:[%s1] sm:$0xf]
    %v31 = vld [vmem:[%s1 + $0x4] sm:$0xf]
    %v32 = vld [vmem:[%s2] sm:$0x1]
    %v34 = vlaneseq
    %v35 = vshrl.u32 %v34, 7
    %v36 = vsub.s32 0, %v35
    %v37 = vrot.slane %v32, %v36
    %v41 = vunpack.c.l.b16 %v30
    %v42 = vunpack.c.l.b16 %v31
    %v43 = vpack.c.b16 %v42, %v41
    %vm45 = vcmask 130048
    %v47 = vsel %vm45, %v29, 0
    %49 = vmatprep.subr.bf16.mxu0 0
    %50 = vmatpush1.bf16.msra.mxu0 %v43
    %51 = vmatprep.subr.bf16.mxu0 0
    %52 = vmatpush1.bf16.msra.mxu0 0
    %53 = vmatprep.subr.bf16.mxu0 0
    %54 = vmatpush1.bf16.msra.mxu0 0
    %55 = vmatprep.subr.bf16.mxu0 0
    %56 = vmatpush1.bf16.msra.mxu0 0
    %57 = vmatprep.subr.bf16.mxu0 0
    %58 = vmatpush1.bf16.msra.mxu0 0
    %59 = vmatprep.subr.bf16.mxu0 0
    %60 = vmatpush1.bf16.msra.mxu0 0
    %61 = vmatprep.subr.bf16.mxu0 0
    %62 = vmatpush1.bf16.msra.mxu0 0
    %63 = vmatprep.subr.bf16.mxu0 0
    %64 = vmatpush1.bf16.msra.mxu0 0
    %65 = vmatprep.subr.bf16.mxu0 0
    %66 = vmatpush1.bf16.msra.mxu0 0
    %67 = vmatprep.subr.bf16.mxu0 0
    %68 = vmatpush1.bf16.msra.mxu0 0
    %69 = vmatprep.subr.bf16.mxu0 0
    %70 = vmatpush1.bf16.msra.mxu0 0
    %71 = vmatprep.subr.bf16.mxu0 0
    %72 = vmatpush1.bf16.msra.mxu0 0
    %73 = vmatprep.subr.bf16.mxu0 0
    %74 = vmatpush1.bf16.msra.mxu0 0
    %75 = vmatprep.subr.bf16.mxu0 0
    %76 = vmatpush1.bf16.msra.mxu0 0
    %77 = vmatprep.subr.bf16.mxu0 0
    %78 = vmatpush1.bf16.msra.mxu0 0
    %79 = vmatprep.subr.bf16.mxu0 0
    %80 = vmatpush1.bf16.msra.mxu0 0
    %81 = vmatprep.mubr.bf16.mxu0 0
    %82 = vmatmul.mubr.bf16.gmra.mrb[0].mxu0 %v47
    %v83 = vpop.f32.mrb[0].mxu0
    %v84 = vadd.f32 %v37, %v83
    %v85 = vpop.f32.mrb[0].mxu0
    %v86 = vpop.f32.mrb[0].mxu0
    %v87 = vpop.f32.mrb[0].mxu0
    %88 = vdwg.mxu0
    %v89 = vtanh.pop %v84
    %v90 = vpack.c.bf16 %v89, %v89
    %v91 = vld [vmem:[%s3] sm:$0xf]
    %v92 = vld [vmem:[%s3 + $0x4] sm:$0xf]
    %v93 = vld [vmem:[%s3 + $0x8] sm:$0xf]
    %v94 = vld [vmem:[%s3 + $0xc] sm:$0xf]
    %v95 = vld [vmem:[%s3 + $0x10] sm:$0xf]
    %v96 = vld [vmem:[%s3 + $0x14] sm:$0xf]
    %v97 = vld [vmem:[%s3 + $0x18] sm:$0xf]
    %v98 = vld [vmem:[%s3 + $0x1c] sm:$0xf]
    %v99 = vld [vmem:[%s3 + $0x20] sm:$0xf]
    %v100 = vld [vmem:[%s3 + $0x24] sm:$0xf]
    %v101 = vld [vmem:[%s3 + $0x28] sm:$0xf]
    %v102 = vld [vmem:[%s3 + $0x2c] sm:$0xf]
    %v103 = vld [vmem:[%s3 + $0x30] sm:$0xf]
    %v104 = vld [vmem:[%s3 + $0x34] sm:$0xf]
    %v105 = vld [vmem:[%s3 + $0x38] sm:$0xf]
    %v106 = vld [vmem:[%s3 + $0x3c] sm:$0xf]
    %v107 = vld [vmem:[%s4] sm:$0x1]
    %v109 = vlaneseq
    %v110 = vshrl.u32 %v109, 7
    %v111 = vsub.s32 0, %v110
    %v112 = vrot.slane %v107, %v111
    %v130 = vunpack.c.l.b16 %v91
    %v131 = vunpack.c.l.b16 %v92
    %v132 = vunpack.c.l.b16 %v93
    %v133 = vunpack.c.l.b16 %v94
    %v134 = vunpack.c.l.b16 %v95
    %v135 = vunpack.c.l.b16 %v96
    %v136 = vunpack.c.l.b16 %v97
    %v137 = vunpack.c.l.b16 %v98
    %v138 = vunpack.c.l.b16 %v99
    %v139 = vunpack.c.l.b16 %v100
    %v140 = vunpack.c.l.b16 %v101
    %v141 = vunpack.c.l.b16 %v102
    %v142 = vunpack.c.l.b16 %v103
    %v143 = vunpack.c.l.b16 %v104
    %v144 = vunpack.c.l.b16 %v105
    %v145 = vunpack.c.l.b16 %v106
    %v146 = vpack.c.b16 %v131, %v130
    %v147 = vpack.c.b16 %v133, %v132
    %v148 = vpack.c.b16 %v135, %v134
    %v149 = vpack.c.b16 %v137, %v136
    %v150 = vpack.c.b16 %v139, %v138
    %v151 = vpack.c.b16 %v141, %v140
    %v152 = vpack.c.b16 %v143, %v142
    %v153 = vpack.c.b16 %v145, %v144
    %162 = vmatprep.subr.bf16.mxu0 0
    %163 = vmatpush1.bf16.msra.mxu0 %v146
    %164 = vmatprep.subr.bf16.mxu0 0
    %165 = vmatpush1.bf16.msra.mxu0 %v147
    %166 = vmatprep.subr.bf16.mxu0 0
    %167 = vmatpush1.bf16.msra.mxu0 %v148
    %168 = vmatprep.subr.bf16.mxu0 0
    %169 = vmatpush1.bf16.msra.mxu0 %v149
    %170 = vmatprep.subr.bf16.mxu0 0
    %171 = vmatpush1.bf16.msra.mxu0 %v150
    %172 = vmatprep.subr.bf16.mxu0 0
    %173 = vmatpush1.bf16.msra.mxu0 %v151
    %174 = vmatprep.subr.bf16.mxu0 0
    %175 = vmatpush1.bf16.msra.mxu0 %v152
    %176 = vmatprep.subr.bf16.mxu0 0
    %177 = vmatpush1.bf16.msra.mxu0 %v153
    %178 = vmatprep.subr.bf16.mxu0 0
    %179 = vmatpush1.bf16.msra.mxu0 0
    %180 = vmatprep.subr.bf16.mxu0 0
    %181 = vmatpush1.bf16.msra.mxu0 0
    %182 = vmatprep.subr.bf16.mxu0 0
    %183 = vmatpush1.bf16.msra.mxu0 0
    %184 = vmatprep.subr.bf16.mxu0 0
    %185 = vmatpush1.bf16.msra.mxu0 0
    %186 = vmatprep.subr.bf16.mxu0 0
    %187 = vmatpush1.bf16.msra.mxu0 0
    %188 = vmatprep.subr.bf16.mxu0 0
    %189 = vmatpush1.bf16.msra.mxu0 0
    %190 = vmatprep.subr.bf16.mxu0 0
    %191 = vmatpush1.bf16.msra.mxu0 0
    %192 = vmatprep.subr.bf16.mxu0 0
    %193 = vmatpush1.bf16.msra.mxu0 0
    %194 = vmatprep.mubr.bf16.mxu0 0
    %195 = vmatmul.mubr.bf16.gmra.mrb[0].mxu0 %v90
    %v196 = vpop.f32.mrb[0].mxu0
    %v197 = vadd.f32 %v112, %v196
    %v198 = vpop.f32.mrb[0].mxu0
    %v199 = vpop.f32.mrb[0].mxu0
    %v200 = vpop.f32.mrb[0].mxu0
    %201 = vdwg.mxu0
    %v202 = vtanh.pop %v197
    %v203 = vpack.c.bf16 %v202, %v202
    %v204 = vld [vmem:[%s5] sm:$0xf]
    %v205 = vld [vmem:[%s5 + $0x4] sm:$0xf]
    %v206 = vld [vmem:[%s5 + $0x8] sm:$0xf]
    %v207 = vld [vmem:[%s5 + $0xc] sm:$0xf]
    %v208 = vld [vmem:[%s5 + $0x10] sm:$0xf]
    %v209 = vld [vmem:[%s5 + $0x14] sm:$0xf]
    %v210 = vld [vmem:[%s5 + $0x18] sm:$0xf]
    %v211 = vld [vmem:[%s5 + $0x1c] sm:$0xf]
    %v212 = vld [vmem:[%s5 + $0x20] sm:$0xf]
    %v213 = vld [vmem:[%s5 + $0x24] sm:$0xf]
    %v214 = vld [vmem:[%s5 + $0x28] sm:$0xf]
    %v215 = vld [vmem:[%s5 + $0x2c] sm:$0xf]
    %v216 = vld [vmem:[%s5 + $0x30] sm:$0xf]
    %v217 = vld [vmem:[%s5 + $0x34] sm:$0xf]
    %v218 = vld [vmem:[%s5 + $0x38] sm:$0xf]
    %v219 = vld [vmem:[%s5 + $0x3c] sm:$0xf]
    %v220 = vld [vmem:[%s6] sm:$0x1]
    %v222 = vlaneseq
    %v223 = vshrl.u32 %v222, 7
    %v224 = vsub.s32 0, %v223
    %v225 = vrot.slane %v220, %v224
    %v243 = vunpack.c.l.b16 %v204
    %v244 = vunpack.c.l.b16 %v205
    %v245 = vunpack.c.l.b16 %v206
    %v246 = vunpack.c.l.b16 %v207
    %v247 = vunpack.c.l.b16 %v208
    %v248 = vunpack.c.l.b16 %v209
    %v249 = vunpack.c.l.b16 %v210
    %v250 = vunpack.c.l.b16 %v211
    %v251 = vunpack.c.l.b16 %v212
    %v252 = vunpack.c.l.b16 %v213
    %v253 = vunpack.c.l.b16 %v214
    %v254 = vunpack.c.l.b16 %v215
    %v255 = vunpack.c.l.b16 %v216
    %v256 = vunpack.c.l.b16 %v217
    %v257 = vunpack.c.l.b16 %v218
    %v258 = vunpack.c.l.b16 %v219
    %v259 = vpack.c.b16 %v244, %v243
    %v260 = vpack.c.b16 %v246, %v245
    %v261 = vpack.c.b16 %v248, %v247
    %v262 = vpack.c.b16 %v250, %v249
    %v263 = vpack.c.b16 %v252, %v251
    %v264 = vpack.c.b16 %v254, %v253
    %v265 = vpack.c.b16 %v256, %v255
    %v266 = vpack.c.b16 %v258, %v257
    %275 = vmatprep.subr.bf16.mxu0 0
    %276 = vmatpush1.bf16.msra.mxu0 %v259
    %277 = vmatprep.subr.bf16.mxu0 0
    %278 = vmatpush1.bf16.msra.mxu0 %v260
    %279 = vmatprep.subr.bf16.mxu0 0
    %280 = vmatpush1.bf16.msra.mxu0 %v261
    %281 = vmatprep.subr.bf16.mxu0 0
    %282 = vmatpush1.bf16.msra.mxu0 %v262
    %283 = vmatprep.subr.bf16.mxu0 0
    %284 = vmatpush1.bf16.msra.mxu0 %v263
    %285 = vmatprep.subr.bf16.mxu0 0
    %286 = vmatpush1.bf16.msra.mxu0 %v264
    %287 = vmatprep.subr.bf16.mxu0 0
    %288 = vmatpush1.bf16.msra.mxu0 %v265
    %289 = vmatprep.subr.bf16.mxu0 0
    %290 = vmatpush1.bf16.msra.mxu0 %v266
    %291 = vmatprep.subr.bf16.mxu0 0
    %292 = vmatpush1.bf16.msra.mxu0 0
    %293 = vmatprep.subr.bf16.mxu0 0
    %294 = vmatpush1.bf16.msra.mxu0 0
    %295 = vmatprep.subr.bf16.mxu0 0
    %296 = vmatpush1.bf16.msra.mxu0 0
    %297 = vmatprep.subr.bf16.mxu0 0
    %298 = vmatpush1.bf16.msra.mxu0 0
    %299 = vmatprep.subr.bf16.mxu0 0
    %300 = vmatpush1.bf16.msra.mxu0 0
    %301 = vmatprep.subr.bf16.mxu0 0
    %302 = vmatpush1.bf16.msra.mxu0 0
    %303 = vmatprep.subr.bf16.mxu0 0
    %304 = vmatpush1.bf16.msra.mxu0 0
    %305 = vmatprep.subr.bf16.mxu0 0
    %306 = vmatpush1.bf16.msra.mxu0 0
    %307 = vmatprep.mubr.bf16.mxu0 0
    %308 = vmatmul.mubr.bf16.gmra.mrb[0].mxu0 %v203
    %v309 = vpop.f32.mrb[0].mxu0
    %v310 = vadd.f32 %v225, %v309
    %v311 = vpop.f32.mrb[0].mxu0
    %v312 = vpop.f32.mrb[0].mxu0
    %v313 = vpop.f32.mrb[0].mxu0
    %314 = vdwg.mxu0
    %315 = vst [vmem:[#allocation2] sm:$0xff] %v310
    // Predicated region
    $region30: #{_ner_pallas_forward.1} parent=1 // pred_check
      _
    $region31: #{_ner_pallas_forward.1} parent=1 // pred_check_branch
      %317 = sbr.rel (0) target = $region33
    $region32: #{_ner_pallas_forward.1} parent=1 // pred_region
      %s319 = ssub.s32 128, 128
      %320 = vsyncadd [#allocation3], %s319
      %s322 = sshll.u32 [#allocation2], 4
      %s323 = int_to_ptr.vmem [resolvable:$true] %s322
      %325 = dma.vmem_to_hbm [thread:$0]  %s323, 128, %s7, [#allocation3]
    $region33: #{_ner_pallas_forward.1} parent=1 // pred_fallthru
      _
    // Predicated region
    $region34: #{_ner_pallas_forward.1} parent=1 // pred_check
      _
    $region35: #{_ner_pallas_forward.1} parent=1 // pred_check_branch
      %327 = sbr.rel (0) target = $region37
    $region36: #{_ner_pallas_forward.1} parent=1 // pred_region
      %328 = dma.done [#allocation3], 128
    $region37: #{_ner_pallas_forward.1} parent=1 // pred_fallthru
      _
    %329 = vsyncpa [#allocation3], 1

</llo_original>
